<compile_context>
chip_gen: v7x
topology: tpu7x:2x2x1
jax: 0.10.0
libtpu: 0.0.40
codegen_flags: <defaults>
</compile_context>

<pallas_src>
import functools

import jax
import jax.numpy as jnp
from jax.experimental import pallas as pl
from jax.experimental.pallas import tpu as pltpu


# --------------------------------------------------------------------------- utils

def _lane_tiling(n, max_tile=2048):
    """Return (n, n padded to a 128 multiple, lane tile dividing the padded size).

    The tile is capped so that the grid has >= 2 steps whenever the padded size allows
    it (so the "parallel" grid axis can shard across the two v7x TensorCores)."""
    lanes = 128
    n_pad = -(-n // lanes) * lanes
    cap = min(max_tile, n_pad)
    if n_pad >= 2 * lanes:
        cap = min(cap, n_pad // 2)
    tile = max(lanes, (cap // lanes) * lanes)
    while n_pad % tile:
        tile -= lanes
    return n, n_pad, tile


def _vmem_limit(per_step_bytes):
    # double-buffered in/out tiles + headroom; clamp below v7x's 64 MiB physical VMEM.
    return int(min(48 * 1024 * 1024, max(4 * per_step_bytes, 16 * 1024 * 1024)))


def _round8(n):
    return -(-n // 8) * 8


# ------------------------------------------------------- exact GELU (in-kernel erf)

def _erf_poly(x):
    # Abramowitz & Stegun 7.1.26, max abs error 1.5e-7 — well inside the 1e-4 check.
    # TODO(synk): switch to jax.lax.erf if/when a Mosaic lowering is guaranteed.
    p = 0.3275911
    a1, a2, a3, a4, a5 = (0.254829592, -0.284496736, 1.421413741,
                          -1.453152027, 1.061405429)
    ax = jnp.abs(x)
    t = 1.0 / (1.0 + p * ax)
    poly = ((((a5 * t + a4) * t + a3) * t + a2) * t + a1) * t
    e = 1.0 - poly * jnp.exp(-ax * ax)           # exp rides the EUP slot
    return jnp.where(x < 0.0, -e, e)


def _gelu_exact(x):
    return 0.5 * x * (1.0 + _erf_poly(x * 0.7071067811865476))


# ------------------------------------------------- spectral channel-mixing kernel

def _spectral_mix_kernel(x_ref, w_ref, o_ref, *, B, Ci, Co):
    """[out_r; out_i][b,:,m] = sum_i xr[b,i,m]*[wr;wi][i,:,m] + xi[b,i,m]*[-wi;wr][i,:,m]

    x_ref: (2*B*Ci,   TM)  rows [0:B*Ci] = Re(x), rows [B*Ci:] = Im(x), row = b*Ci + i
    w_ref: (4*Ci*Co,  TM)  section A (rows [0:2*Ci*Co]): per-i blocks [wr_i; wi_i]
                           section B (rows [2*Ci*Co:]) : per-i blocks [-wi_i; wr_i]
    o_ref: (2*B*Co,   TM)  per-batch contiguous [Re(out) (Co rows); Im(out) (Co rows)]
    """
    TM = x_ref.shape[-1]
    nbc = B * Ci
    C2 = 2 * Co
    nA = Ci * C2
    for b in range(B):
        acc = jnp.zeros((C2, TM), jnp.float32)        # full 8-sublane accumulator
        for i in range(Ci):                            # tiny unroll at these sizes
            r = b * Ci + i
            xr = x_ref[r:r + 1, :]                     # (1, TM)
            xi = x_ref[nbc + r:nbc + r + 1, :]         # (1, TM)
            wa = w_ref[i * C2:(i + 1) * C2, :]         # (2*Co, TM) = [wr; wi]
            wb = w_ref[nA + i * C2:nA + (i + 1) * C2, :]   # (2*Co, TM) = [-wi; wr]
            acc = acc + xr * wa + xi * wb
        o_ref[b * C2:(b + 1) * C2, :] = acc            # unmasked full-height store


def _spectral_mix(x_packed, w_packed, B, Ci, Co, TM):
    Mp = x_packed.shape[-1]
    rows_in = 2 * B * Ci
    rows_w = 4 * Ci * Co     # weights are re-streamed per lane tile (not resident)
    rows_out = 2 * B * Co
    per_step = 4 * TM * (rows_in + rows_w + rows_out)
    return pl.pallas_call(
        functools.partial(_spectral_mix_kernel, B=B, Ci=Ci, Co=Co),
        out_shape=jax.ShapeDtypeStruct((rows_out, Mp), jnp.float32),
        grid=(Mp // TM,),
        in_specs=[
            pl.BlockSpec((rows_in, TM), lambda j: (0, j)),
            pl.BlockSpec((rows_w, TM), lambda j: (0, j)),
        ],
        out_specs=pl.BlockSpec((rows_out, TM), lambda j: (0, j)),
        compiler_params=pltpu.CompilerParams(
            dimension_semantics=("parallel",),
            vmem_limit_bytes=_vmem_limit(per_step)),
        cost_estimate=pl.CostEstimate(
            flops=8 * B * Ci * Co * Mp,
            transcendentals=0,
            bytes_accessed=4 * Mp * (rows_in + rows_w + rows_out)),
    )(x_packed, w_packed)


# --------------------------------- fused 1x1 conv + residual add + GELU kernel

def _pointwise_conv_add_gelu_kernel(wc_ref, b_ref, x_ref, s_ref, o_ref):
    """o = gelu(s + bias + wc @ x) for one lane tile of (batch*pixels).

    wc_ref: (Cop, Cip)  padded 1x1 conv weight     b_ref: (Cop, 1) padded bias
    x_ref : (Cip, TS)   channel-major input        s_ref/o_ref: (Cop, TS)
    """
    acc = s_ref[...] + b_ref[...] + jnp.dot(
        wc_ref[...], x_ref[...], preferred_element_type=jnp.float32)  # MXU
    o_ref[...] = _gelu_exact(acc)                                     # EUP/VPU epilogue


def _pointwise_conv_add_gelu(x, spec_out, w_conv, b_conv):
    B, Ci, H, W = x.shape
    Co = w_conv.shape[0]
    Cip, Cop = _round8(Ci), _round8(Co)
    S, Sp, TS = _lane_tiling(B * H * W)

    # channel-major, lane-dense relayout: channels on sublanes, batch*pixels on lanes.
    x2 = jnp.pad(x.transpose(1, 0, 2, 3).reshape(Ci, S),
                 ((0, Cip - Ci), (0, Sp - S)))
    s2 = jnp.pad(spec_out.transpose(1, 0, 2, 3).reshape(Co, S),
                 ((0, Cop - Co), (0, Sp - S)))
    wc = jnp.pad(w_conv.astype(jnp.float32), ((0, Cop - Co), (0, Cip - Ci)))
    bc = jnp.pad(b_conv.astype(jnp.float32).reshape(Co, 1), ((0, Cop - Co), (0, 0)))

    per_step = 4 * TS * (Cip + 2 * Cop)
    out = pl.pallas_call(
        _pointwise_conv_add_gelu_kernel,
        out_shape=jax.ShapeDtypeStruct((Cop, Sp), jnp.float32),
        grid=(Sp // TS,),
        in_specs=[
            pl.BlockSpec((Cop, Cip), lambda j: (0, 0)),   # resident across the grid
            pl.BlockSpec((Cop, 1), lambda j: (0, 0)),
            pl.BlockSpec((Cip, TS), lambda j: (0, j)),
            pl.BlockSpec((Cop, TS), lambda j: (0, j)),
        ],
        out_specs=pl.BlockSpec((Cop, TS), lambda j: (0, j)),
        compiler_params=pltpu.CompilerParams(
            dimension_semantics=("parallel",),
            vmem_limit_bytes=_vmem_limit(per_step)),
        cost_estimate=pl.CostEstimate(
            flops=2 * Cop * Cip * Sp + 2 * Cop * Sp + 8 * Cop * Sp,
            transcendentals=Cop * Sp,
            bytes_accessed=4 * (Cip * Sp + 2 * Cop * Sp + Cop * Cip + Cop)),
    )(wc, bc, x2, s2)
    return out[:Co, :S].reshape(Co, B, H, W).transpose(1, 0, 2, 3)


# --------------------------------------------------------------- module forward

def pack_spectral_weights(w1r, w1i, w2r, w2i):
    """One-time packing of the spectral weights into the kernel layout (outside jit).

    Layout: (4*Ci*Co, Mp).  Section A: per-i blocks [wr_i; wi_i] (2*Co rows each);
    section B: per-i blocks [-wi_i; wr_i].  Pre-building section B costs 2x the weight
    bytes but halves the in-kernel VALU work vs the 4-term complex MAC."""
    Ci, Co, m1, m2 = w1r.shape
    M, Mp, _ = _lane_tiling(2 * m1 * m2)

    def flat(w):
        return w.reshape(Ci, Co, m1 * m2).astype(jnp.float32)

    wr = jnp.concatenate([flat(w1r), flat(w2r)], axis=-1)         # (Ci, Co, M)
    wi = jnp.concatenate([flat(w1i), flat(w2i)], axis=-1)
    wa = jnp.concatenate([wr, wi], axis=1)                        # (Ci, 2*Co, M)
    wb = jnp.concatenate([-wi, wr], axis=1)                       # (Ci, 2*Co, M)
    w = jnp.concatenate([wa, wb], axis=0).reshape(4 * Ci * Co, M)
    return jnp.pad(w, ((0, 0), (0, Mp - M)))


def operator_block_2d(x, w_spectral_packed, w_conv, b_conv, *,
                      dim1, dim2, modes1, modes2):
    """OperatorBlock_2D.forward (Normalize=False, Non_Lin=True, Apply_linear_transform=True)."""
    B, Ci, H, W = x.shape
    Co = w_conv.shape[0]
    m1, m2 = modes1, modes2
    M, Mp, TM = _lane_tiling(2 * m1 * m2)
    assert w_spectral_packed.shape == (4 * Ci * Co, Mp), w_spectral_packed.shape

    # ---- SpectralConv2d_Uno: forward FFT (XLA; no Pallas FFT primitive) ----
    x_ft = jnp.fft.rfft2(x, norm="forward")                       # (B,Ci,H,W//2+1) c64
    xc = jnp.concatenate(
        [x_ft[:, :, :m1, :m2].reshape(B, Ci, m1 * m2),
         x_ft[:, :, H - m1:, :m2].reshape(B, Ci, m1 * m2)], axis=-1)   # (B,Ci,M)
    x_packed = jnp.pad(
        jnp.concatenate([jnp.real(xc), jnp.imag(xc)], axis=0).reshape(2 * B * Ci, M),
        ((0, 0), (0, Mp - M)))

    # ---- Pallas hot path: complex per-mode channel contraction ----
    mix = _spectral_mix(x_packed, w_spectral_packed, B, Ci, Co, TM)    # (2*B*Co, Mp)
    mix = mix.reshape(B, 2, Co, Mp)
    out_c = (mix[:, 0, :, :M] + 1j * mix[:, 1, :, :M]).astype(jnp.complex64)
    o1 = out_c[..., :m1 * m2].reshape(B, Co, m1, m2)
    o2 = out_c[..., m1 * m2:].reshape(B, Co, m1, m2)

    # assemble the rfft2 coefficient grid with one concat + one pad (no scatters)
    mid = jnp.zeros((B, Co, dim1 - 2 * m1, m2), jnp.complex64)
    out_ft = jnp.pad(jnp.concatenate([o1, mid, o2], axis=2),
                     ((0, 0), (0, 0), (0, 0), (0, dim2 // 2 + 1 - m2)))
    # TODO(synk): rfft2 / irfft2 remain XLA ops — there is no Pallas FFT primitive.
    x1 = jnp.fft.irfft2(out_ft, s=(dim1, dim2), norm="forward")   # (B,Co,dim1,dim2)

    # ---- pointwise_op_2D (1x1 conv) + residual add + exact GELU fused in Pallas ----
    if (H, W) != (dim1, dim2):
        # TODO(synk): torch's antialiased bicubic resize (align_corners=True) has no
        # clean JAX/Pallas equivalent; only the size-preserving (identity) path is done.
        raise NotImplementedError("output grid must equal the input grid in this kernel")
    return _pointwise_conv_add_gelu(x, x1, w_conv, b_conv)        # (B,Co,dim1,dim2)


# --------------------------------------------------------------------- reference

def _reference(x, w1r, w1i, w2r, w2i, w_conv, b_conv, dim1, dim2, m1, m2):
    B, Ci, H, W = x.shape
    Co = w_conv.shape[0]
    w1 = (w1r + 1j * w1i).astype(jnp.complex64)
    w2 = (w2r + 1j * w2i).astype(jnp.complex64)
    x_ft = jnp.fft.rfft2(x, norm="forward")
    out_ft = jnp.zeros((B, Co, dim1, dim2 // 2 + 1), jnp.complex64)
    out_ft = out_ft.at[:, :, :m1, :m2].set(
        jnp.einsum("bixy,ioxy->boxy", x_ft[:, :, :m1, :m2], w1))
    out_ft = out_ft.at[:, :, dim1 - m1:, :m2].set(
        jnp.einsum("bixy,ioxy->boxy", x_ft[:, :, H - m1:, :m2], w2))
    x1 = jnp.fft.irfft2(out_ft, s=(dim1, dim2), norm="forward")
    x2 = jnp.einsum("oi,bihw->bohw", w_conv, x) + b_conv[None, :, None, None]
    # bicubic resize to the same grid with align_corners=True is the identity here.
    return jax.nn.gelu(x1 + x2, approximate=False)


# -------------------------------------------------------------------------- main

if __name__ == "__main__":
    # Module config: in_codim=4, out_codim=4, dim1=dim2=16 (== input grid),
    # modes1 = dim1//2 - 1 = 7, modes2 = dim2//2 = 8.
    B, Ci, Co = 2, 4, 4
    H = W = 16
    dim1 = dim2 = 16
    modes1, modes2 = dim1 // 2 - 1, dim2 // 2
    scale = (1.0 / (2 * Ci)) ** 0.5

    key = jax.random.PRNGKey(0)
    kx, k1r, k1i, k2r, k2i, kcw, kcb = jax.random.split(key, 7)
    x = jax.random.normal(kx, (B, Ci, H, W), dtype=jnp.float32)
    w1r = scale * jax.random.normal(k1r, (Ci, Co, modes1, modes2), jnp.float32)
    w1i = scale * jax.random.normal(k1i, (Ci, Co, modes1, modes2), jnp.float32)
    w2r = scale * jax.random.normal(k2r, (Ci, Co, modes1, modes2), jnp.float32)
    w2i = scale * jax.random.normal(k2i, (Ci, Co, modes1, modes2), jnp.float32)
    w_conv = (1.0 / Ci) ** 0.5 * jax.random.normal(kcw, (Co, Ci), jnp.float32)
    b_conv = 0.1 * jax.random.normal(kcb, (Co,), jnp.float32)

    # Pack / pad the spectral weights once, outside the jit'd hot path.
    w_packed = pack_spectral_weights(w1r, w1i, w2r, w2i)

    fwd = jax.jit(functools.partial(
        operator_block_2d, dim1=dim1, dim2=dim2, modes1=modes1, modes2=modes2))
    out = jax.block_until_ready(fwd(x, w_packed, w_conv, b_conv))

    ref = _reference(x, w1r, w1i, w2r, w2i, w_conv, b_conv, dim1, dim2, modes1, modes2)
    assert out.shape == (B, Co, dim1, dim2), out.shape
    err = float(jnp.max(jnp.abs(out - ref)))
    assert jnp.allclose(out, ref, atol=1e-4, rtol=1e-4), f"mismatch vs reference: {err}"

    print("KERNEL_OK")
</pallas_src>

<mosaic_0001>
module attributes {stable_mosaic.version = 11 : i64} {
  func.func @_spectral_mix_kernel(%arg0: i32, %arg1: memref<16x128xf32, #tpu.memory_space<vmem>>, %arg2: memref<64x128xf32, #tpu.memory_space<vmem>>, %arg3: memref<16x128xf32, #tpu.memory_space<vmem>>) attributes {dimension_semantics = [#tpu.dimension_semantics<parallel>], iteration_bounds = array<i64: 1>, scalar_prefetch = 0 : i64, scratch_operands = 0 : i64, tpu.core_type = #tpu.core_type<tc>, window_params = [{transform_indices = @transform_0, window_bounds = array<i64: 16, 128>}, {transform_indices = @transform_1, window_bounds = array<i64: 64, 128>}, {transform_indices = @transform_2, window_bounds = array<i64: 16, 128>}]} {
    %cst = arith.constant 0.000000e+00 : f32
    %0 = vector.broadcast %cst : f32 to vector<8x128xf32>
    %c0 = arith.constant 0 : index
    %c0_0 = arith.constant 0 : index
    %1 = vector.load %arg1[%c0, %c0_0] : memref<16x128xf32, #tpu.memory_space<vmem>>, vector<1x128xf32>
    %c8 = arith.constant 8 : index
    %c0_1 = arith.constant 0 : index
    %2 = vector.load %arg1[%c8, %c0_1] : memref<16x128xf32, #tpu.memory_space<vmem>>, vector<1x128xf32>
    %c0_2 = arith.constant 0 : index
    %c0_3 = arith.constant 0 : index
    %3 = vector.load %arg2[%c0_2, %c0_3] : memref<64x128xf32, #tpu.memory_space<vmem>>, vector<8x128xf32>
    %c32 = arith.constant 32 : index
    %c0_4 = arith.constant 0 : index
    %4 = vector.load %arg2[%c32, %c0_4] : memref<64x128xf32, #tpu.memory_space<vmem>>, vector<8x128xf32>
    %5 = vector.broadcast %1 : vector<1x128xf32> to vector<8x128xf32>
    %6 = arith.mulf %5, %3 : vector<8x128xf32>
    %7 = arith.addf %0, %6 : vector<8x128xf32>
    %8 = vector.broadcast %2 : vector<1x128xf32> to vector<8x128xf32>
    %9 = arith.mulf %8, %4 : vector<8x128xf32>
    %10 = arith.addf %7, %9 : vector<8x128xf32>
    %c1 = arith.constant 1 : index
    %c0_5 = arith.constant 0 : index
    %11 = vector.load %arg1[%c1, %c0_5] : memref<16x128xf32, #tpu.memory_space<vmem>>, vector<1x128xf32>
    %c9 = arith.constant 9 : index
    %c0_6 = arith.constant 0 : index
    %12 = vector.load %arg1[%c9, %c0_6] : memref<16x128xf32, #tpu.memory_space<vmem>>, vector<1x128xf32>
    %c8_7 = arith.constant 8 : index
    %c0_8 = arith.constant 0 : index
    %13 = vector.load %arg2[%c8_7, %c0_8] : memref<64x128xf32, #tpu.memory_space<vmem>>, vector<8x128xf32>
    %c40 = arith.constant 40 : index
    %c0_9 = arith.constant 0 : index
    %14 = vector.load %arg2[%c40, %c0_9] : memref<64x128xf32, #tpu.memory_space<vmem>>, vector<8x128xf32>
    %15 = vector.broadcast %11 : vector<1x128xf32> to vector<8x128xf32>
    %16 = arith.mulf %15, %13 : vector<8x128xf32>
    %17 = arith.addf %10, %16 : vector<8x128xf32>
    %18 = vector.broadcast %12 : vector<1x128xf32> to vector<8x128xf32>
    %19 = arith.mulf %18, %14 : vector<8x128xf32>
    %20 = arith.addf %17, %19 : vector<8x128xf32>
    %c2 = arith.constant 2 : index
    %c0_10 = arith.constant 0 : index
    %21 = vector.load %arg1[%c2, %c0_10] : memref<16x128xf32, #tpu.memory_space<vmem>>, vector<1x128xf32>
    %c10 = arith.constant 10 : index
    %c0_11 = arith.constant 0 : index
    %22 = vector.load %arg1[%c10, %c0_11] : memref<16x128xf32, #tpu.memory_space<vmem>>, vector<1x128xf32>
    %c16 = arith.constant 16 : index
    %c0_12 = arith.constant 0 : index
    %23 = vector.load %arg2[%c16, %c0_12] : memref<64x128xf32, #tpu.memory_space<vmem>>, vector<8x128xf32>
    %c48 = arith.constant 48 : index
    %c0_13 = arith.constant 0 : index
    %24 = vector.load %arg2[%c48, %c0_13] : memref<64x128xf32, #tpu.memory_space<vmem>>, vector<8x128xf32>
    %25 = vector.broadcast %21 : vector<1x128xf32> to vector<8x128xf32>
    %26 = arith.mulf %25, %23 : vector<8x128xf32>
    %27 = arith.addf %20, %26 : vector<8x128xf32>
    %28 = vector.broadcast %22 : vector<1x128xf32> to vector<8x128xf32>
    %29 = arith.mulf %28, %24 : vector<8x128xf32>
    %30 = arith.addf %27, %29 : vector<8x128xf32>
    %c3 = arith.constant 3 : index
    %c0_14 = arith.constant 0 : index
    %31 = vector.load %arg1[%c3, %c0_14] : memref<16x128xf32, #tpu.memory_space<vmem>>, vector<1x128xf32>
    %c11 = arith.constant 11 : index
    %c0_15 = arith.constant 0 : index
    %32 = vector.load %arg1[%c11, %c0_15] : memref<16x128xf32, #tpu.memory_space<vmem>>, vector<1x128xf32>
    %c24 = arith.constant 24 : index
    %c0_16 = arith.constant 0 : index
    %33 = vector.load %arg2[%c24, %c0_16] : memref<64x128xf32, #tpu.memory_space<vmem>>, vector<8x128xf32>
    %c56 = arith.constant 56 : index
    %c0_17 = arith.constant 0 : index
    %34 = vector.load %arg2[%c56, %c0_17] : memref<64x128xf32, #tpu.memory_space<vmem>>, vector<8x128xf32>
    %35 = vector.broadcast %31 : vector<1x128xf32> to vector<8x128xf32>
    %36 = arith.mulf %35, %33 : vector<8x128xf32>
    %37 = arith.addf %30, %36 : vector<8x128xf32>
    %38 = vector.broadcast %32 : vector<1x128xf32> to vector<8x128xf32>
    %39 = arith.mulf %38, %34 : vector<8x128xf32>
    %40 = arith.addf %37, %39 : vector<8x128xf32>
    %c0_18 = arith.constant 0 : index
    %c0_19 = arith.constant 0 : index
    %41 = vector.load %arg3[%c0_18, %c0_19] : memref<16x128xf32, #tpu.memory_space<vmem>>, vector<8x128xf32>
    tpu.vector_store %arg3[%c0_18, %c0_19], %40 {strides = array<i32>} : memref<16x128xf32, #tpu.memory_space<vmem>>, vector<8x128xf32>,
    %cst_20 = arith.constant 0.000000e+00 : f32
    %42 = vector.broadcast %cst_20 : f32 to vector<8x128xf32>
    %c4 = arith.constant 4 : index
    %c0_21 = arith.constant 0 : index
    %43 = vector.load %arg1[%c4, %c0_21] : memref<16x128xf32, #tpu.memory_space<vmem>>, vector<1x128xf32>
    %c12 = arith.constant 12 : index
    %c0_22 = arith.constant 0 : index
    %44 = vector.load %arg1[%c12, %c0_22] : memref<16x128xf32, #tpu.memory_space<vmem>>, vector<1x128xf32>
    %c0_23 = arith.constant 0 : index
    %c0_24 = arith.constant 0 : index
    %45 = vector.load %arg2[%c0_23, %c0_24] : memref<64x128xf32, #tpu.memory_space<vmem>>, vector<8x128xf32>
    %c32_25 = arith.constant 32 : index
    %c0_26 = arith.constant 0 : index
    %46 = vector.load %arg2[%c32_25, %c0_26] : memref<64x128xf32, #tpu.memory_space<vmem>>, vector<8x128xf32>
    %47 = vector.broadcast %43 : vector<1x128xf32> to vector<8x128xf32>
    %48 = arith.mulf %47, %45 : vector<8x128xf32>
    %49 = arith.addf %42, %48 : vector<8x128xf32>
    %50 = vector.broadcast %44 : vector<1x128xf32> to vector<8x128xf32>
    %51 = arith.mulf %50, %46 : vector<8x128xf32>
    %52 = arith.addf %49, %51 : vector<8x128xf32>
    %c5 = arith.constant 5 : index
    %c0_27 = arith.constant 0 : index
    %53 = vector.load %arg1[%c5, %c0_27] : memref<16x128xf32, #tpu.memory_space<vmem>>, vector<1x128xf32>
    %c13 = arith.constant 13 : index
    %c0_28 = arith.constant 0 : index
    %54 = vector.load %arg1[%c13, %c0_28] : memref<16x128xf32, #tpu.memory_space<vmem>>, vector<1x128xf32>
    %c8_29 = arith.constant 8 : index
    %c0_30 = arith.constant 0 : index
    %55 = vector.load %arg2[%c8_29, %c0_30] : memref<64x128xf32, #tpu.memory_space<vmem>>, vector<8x128xf32>
    %c40_31 = arith.constant 40 : index
    %c0_32 = arith.constant 0 : index
    %56 = vector.load %arg2[%c40_31, %c0_32] : memref<64x128xf32, #tpu.memory_space<vmem>>, vector<8x128xf32>
    %57 = vector.broadcast %53 : vector<1x128xf32> to vector<8x128xf32>
    %58 = arith.mulf %57, %55 : vector<8x128xf32>
    %59 = arith.addf %52, %58 : vector<8x128xf32>
    %60 = vector.broadcast %54 : vector<1x128xf32> to vector<8x128xf32>
    %61 = arith.mulf %60, %56 : vector<8x128xf32>
    %62 = arith.addf %59, %61 : vector<8x128xf32>
    %c6 = arith.constant 6 : index
    %c0_33 = arith.constant 0 : index
    %63 = vector.load %arg1[%c6, %c0_33] : memref<16x128xf32, #tpu.memory_space<vmem>>, vector<1x128xf32>
    %c14 = arith.constant 14 : index
    %c0_34 = arith.constant 0 : index
    %64 = vector.load %arg1[%c14, %c0_34] : memref<16x128xf32, #tpu.memory_space<vmem>>, vector<1x128xf32>
    %c16_35 = arith.constant 16 : index
    %c0_36 = arith.constant 0 : index
    %65 = vector.load %arg2[%c16_35, %c0_36] : memref<64x128xf32, #tpu.memory_space<vmem>>, vector<8x128xf32>
    %c48_37 = arith.constant 48 : index
    %c0_38 = arith.constant 0 : index
    %66 = vector.load %arg2[%c48_37, %c0_38] : memref<64x128xf32, #tpu.memory_space<vmem>>, vector<8x128xf32>
    %67 = vector.broadcast %63 : vector<1x128xf32> to vector<8x128xf32>
    %68 = arith.mulf %67, %65 : vector<8x128xf32>
    %69 = arith.addf %62, %68 : vector<8x128xf32>
    %70 = vector.broadcast %64 : vector<1x128xf32> to vector<8x128xf32>
    %71 = arith.mulf %70, %66 : vector<8x128xf32>
    %72 = arith.addf %69, %71 : vector<8x128xf32>
    %c7 = arith.constant 7 : index
    %c0_39 = arith.constant 0 : index
    %73 = vector.load %arg1[%c7, %c0_39] : memref<16x128xf32, #tpu.memory_space<vmem>>, vector<1x128xf32>
    %c15 = arith.constant 15 : index
    %c0_40 = arith.constant 0 : index
    %74 = vector.load %arg1[%c15, %c0_40] : memref<16x128xf32, #tpu.memory_space<vmem>>, vector<1x128xf32>
    %c24_41 = arith.constant 24 : index
    %c0_42 = arith.constant 0 : index
    %75 = vector.load %arg2[%c24_41, %c0_42] : memref<64x128xf32, #tpu.memory_space<vmem>>, vector<8x128xf32>
    %c56_43 = arith.constant 56 : index
    %c0_44 = arith.constant 0 : index
    %76 = vector.load %arg2[%c56_43, %c0_44] : memref<64x128xf32, #tpu.memory_space<vmem>>, vector<8x128xf32>
    %77 = vector.broadcast %73 : vector<1x128xf32> to vector<8x128xf32>
    %78 = arith.mulf %77, %75 : vector<8x128xf32>
    %79 = arith.addf %72, %78 : vector<8x128xf32>
    %80 = vector.broadcast %74 : vector<1x128xf32> to vector<8x128xf32>
    %81 = arith.mulf %80, %76 : vector<8x128xf32>
    %82 = arith.addf %79, %81 : vector<8x128xf32>
    %c8_45 = arith.constant 8 : index
    %c0_46 = arith.constant 0 : index
    %83 = vector.load %arg3[%c8_45, %c0_46] : memref<16x128xf32, #tpu.memory_space<vmem>>, vector<8x128xf32>
    tpu.vector_store %arg3[%c8_45, %c0_46], %82 {strides = array<i32>} : memref<16x128xf32, #tpu.memory_space<vmem>>, vector<8x128xf32>,
    return
  }
  func.func @transform_0(%arg0: i32) -> (i32, i32) {
    %c0_i32 = arith.constant 0 : i32
    %c0_i32_0 = arith.constant 0 : i32
    return %c0_i32, %arg0 : i32, i32
  }
  func.func @transform_1(%arg0: i32) -> (i32, i32) {
    %c0_i32 = arith.constant 0 : i32
    %c0_i32_0 = arith.constant 0 : i32
    return %c0_i32, %arg0 : i32, i32
  }
  func.func @transform_2(%arg0: i32) -> (i32, i32) {
    %c0_i32 = arith.constant 0 : i32
    %c0_i32_0 = arith.constant 0 : i32
    return %c0_i32, %arg0 : i32, i32
  }
}

module attributes {stable_mosaic.version = 11 : i64} {
  func.func @_pointwise_conv_add_gelu_kernel(%arg0: i32, %arg1: memref<8x8xf32, #tpu.memory_space<vmem>>, %arg2: memref<8x1xf32, #tpu.memory_space<vmem>>, %arg3: memref<8x256xf32, #tpu.memory_space<vmem>>, %arg4: memref<8x256xf32, #tpu.memory_space<vmem>>, %arg5: memref<8x256xf32, #tpu.memory_space<vmem>>) attributes {dimension_semantics = [#tpu.dimension_semantics<parallel>], iteration_bounds = array<i64: 2>, scalar_prefetch = 0 : i64, scratch_operands = 0 : i64, tpu.core_type = #tpu.core_type<tc>, window_params = [{pipeline_mode = #tpu.pipeline_mode<synchronous>, transform_indices = @transform_0, window_bounds = array<i64: 8, 8>}, {pipeline_mode = #tpu.pipeline_mode<synchronous>, transform_indices = @transform_1, window_bounds = array<i64: 8, 1>}, {transform_indices = @transform_2, window_bounds = array<i64: 8, 256>}, {transform_indices = @transform_3, window_bounds = array<i64: 8, 256>}, {transform_indices = @transform_4, window_bounds = array<i64: 8, 256>}]} {
    %c0 = arith.constant 0 : index
    %c0_0 = arith.constant 0 : index
    %0 = vector.load %arg4[%c0, %c0_0] : memref<8x256xf32, #tpu.memory_space<vmem>>, vector<8x256xf32>
    %c0_1 = arith.constant 0 : index
    %c0_2 = arith.constant 0 : index
    %1 = vector.load %arg2[%c0_1, %c0_2] : memref<8x1xf32, #tpu.memory_space<vmem>>, vector<8x1xf32>
    %2 = vector.broadcast %1 : vector<8x1xf32> to vector<8x256xf32>
    %3 = arith.addf %0, %2 : vector<8x256xf32>
    %c0_3 = arith.constant 0 : index
    %c0_4 = arith.constant 0 : index
    %4 = vector.load %arg1[%c0_3, %c0_4] : memref<8x8xf32, #tpu.memory_space<vmem>>, vector<8x8xf32>
    %c0_5 = arith.constant 0 : index
    %c0_6 = arith.constant 0 : index
    %5 = vector.load %arg3[%c0_5, %c0_6] : memref<8x256xf32, #tpu.memory_space<vmem>>, vector<8x256xf32>
    %cst = arith.constant dense<0.000000e+00> : vector<8x256xf32>
    %6 = tpu.matmul %4, %5, %cst {dimension_numbers = #tpu.dot_dimension_numbers<[1], [0], [0], [1], [0, 0, 1, 1], [], []>} : vector<8x8xf32>, vector<8x256xf32>, vector<8x256xf32> -> vector<8x256xf32>
    %7 = arith.addf %3, %6 : vector<8x256xf32>
    %cst_7 = arith.constant 5.000000e-01 : f32
    %8 = vector.broadcast %cst_7 : f32 to vector<8x256xf32>
    %9 = arith.mulf %8, %7 : vector<8x256xf32>
    %cst_8 = arith.constant 0.707106769 : f32
    %10 = vector.broadcast %cst_8 : f32 to vector<8x256xf32>
    %11 = arith.mulf %7, %10 : vector<8x256xf32>
    %12 = math.absf %11 : vector<8x256xf32>
    %cst_9 = arith.constant 0.327591091 : f32
    %13 = vector.broadcast %cst_9 : f32 to vector<8x256xf32>
    %14 = arith.mulf %13, %12 : vector<8x256xf32>
    %cst_10 = arith.constant 1.000000e+00 : f32
    %15 = vector.broadcast %cst_10 : f32 to vector<8x256xf32>
    %16 = arith.addf %15, %14 : vector<8x256xf32>
    %cst_11 = arith.constant 1.000000e+00 : f32
    %17 = vector.broadcast %cst_11 : f32 to vector<8x256xf32>
    %18 = arith.divf %17, %16 : vector<8x256xf32>
    %cst_12 = arith.constant 1.06140542 : f32
    %19 = vector.broadcast %cst_12 : f32 to vector<8x256xf32>
    %20 = arith.mulf %19, %18 : vector<8x256xf32>
    %cst_13 = arith.constant -1.45315206 : f32
    %21 = vector.broadcast %cst_13 : f32 to vector<8x256xf32>
    %22 = arith.addf %20, %21 : vector<8x256xf32>
    %23 = arith.mulf %22, %18 : vector<8x256xf32>
    %cst_14 = arith.constant 1.42141378 : f32
    %24 = vector.broadcast %cst_14 : f32 to vector<8x256xf32>
    %25 = arith.addf %23, %24 : vector<8x256xf32>
    %26 = arith.mulf %25, %18 : vector<8x256xf32>
    %cst_15 = arith.constant -0.284496725 : f32
    %27 = vector.broadcast %cst_15 : f32 to vector<8x256xf32>
    %28 = arith.addf %26, %27 : vector<8x256xf32>
    %29 = arith.mulf %28, %18 : vector<8x256xf32>
    %cst_16 = arith.constant 0.254829586 : f32
    %30 = vector.broadcast %cst_16 : f32 to vector<8x256xf32>
    %31 = arith.addf %29, %30 : vector<8x256xf32>
    %32 = arith.mulf %31, %18 : vector<8x256xf32>
    %cst_17 = arith.constant 0.000000e+00 : f32
    %33 = vector.broadcast %cst_17 : f32 to vector<8x256xf32>
    %34 = arith.subf %33, %12 : vector<8x256xf32>
    %35 = arith.mulf %34, %12 : vector<8x256xf32>
    %36 = math.exp %35 : vector<8x256xf32>
    %37 = arith.mulf %32, %36 : vector<8x256xf32>
    %cst_18 = arith.constant 1.000000e+00 : f32
    %38 = vector.broadcast %cst_18 : f32 to vector<8x256xf32>
    %39 = arith.subf %38, %37 : vector<8x256xf32>
    %cst_19 = arith.constant 0.000000e+00 : f32
    %40 = vector.broadcast %cst_19 : f32 to vector<8x256xf32>
    %41 = arith.cmpf olt, %11, %40 : vector<8x256xf32>
    %cst_20 = arith.constant 0.000000e+00 : f32
    %42 = vector.broadcast %cst_20 : f32 to vector<8x256xf32>
    %43 = arith.subf %42, %39 : vector<8x256xf32>
    %44 = arith.select %41, %43, %39 : vector<8x256xi1>, vector<8x256xf32>
    %cst_21 = arith.constant 1.000000e+00 : f32
    %45 = vector.broadcast %cst_21 : f32 to vector<8x256xf32>
    %46 = arith.addf %45, %44 : vector<8x256xf32>
    %47 = arith.mulf %9, %46 : vector<8x256xf32>
    %c0_22 = arith.constant 0 : index
    %c0_23 = arith.constant 0 : index
    %48 = vector.load %arg5[%c0_22, %c0_23] : memref<8x256xf32, #tpu.memory_space<vmem>>, vector<8x256xf32>
    tpu.vector_store %arg5[%c0_22, %c0_23], %47 {strides = array<i32>} : memref<8x256xf32, #tpu.memory_space<vmem>>, vector<8x256xf32>,
    return
  }
  func.func @transform_0(%arg0: i32) -> (i32, i32) {
    %c0_i32 = arith.constant 0 : i32
    %c0_i32_0 = arith.constant 0 : i32
    %c0_i32_1 = arith.constant 0 : i32
    return %c0_i32, %c0_i32_0 : i32, i32
  }
  func.func @transform_1(%arg0: i32) -> (i32, i32) {
    %c0_i32 = arith.constant 0 : i32
    %c0_i32_0 = arith.constant 0 : i32
    %c0_i32_1 = arith.constant 0 : i32
    return %c0_i32, %c0_i32_0 : i32, i32
  }
  func.func @transform_2(%arg0: i32) -> (i32, i32) {
    %c0_i32 = arith.constant 0 : i32
    %c0_i32_0 = arith.constant 0 : i32
    return %c0_i32, %arg0 : i32, i32
  }
  func.func @transform_3(%arg0: i32) -> (i32, i32) {
    %c0_i32 = arith.constant 0 : i32
    %c0_i32_0 = arith.constant 0 : i32
    return %c0_i32, %arg0 : i32, i32
  }
  func.func @transform_4(%arg0: i32) -> (i32, i32) {
    %c0_i32 = arith.constant 0 : i32
    %c0_i32_0 = arith.constant 0 : i32
    return %c0_i32, %arg0 : i32, i32
  }
}

</mosaic_0001>

<llo_original>
// kernel: reverse.0
$region0: #{reverse.0}
  %s0 = inlined_call_operand.vmem [shape: f32[2,4,16,7], index: 0, kind: input, shape index: {}]
  %s1 = inlined_call_operand.vmem [shape: f32[2,4,16,7], index: 1, kind: output, shape index: {}]
  $region1: #{reverse.0} parent=0
    #allocation0 [shape = 'u8[65536]{0}', space=vmem, size = 0x10000, scoped, tag = 'operand span for operand 0']
    #allocation1 [shape = 'u8[32768]{0}', space=vmem, size = 0x8000, scoped, tag = 'operand span for operand 1']
    %s2 = scalar_lea.vmem [#allocation0], 8
    // Predicated region
    $region2: #{reverse.0} parent=1 // pred_check
      _
    $region3: #{reverse.0} parent=1 // pred_check_branch
      %4 = sbr.rel (0) target = $region5
    $region4: #{reverse.0} parent=1 // pred_region
      // Predicated region
      $region6: #{reverse.0} parent=4 // pred_check
        _
      $region7: #{reverse.0} parent=4 // pred_check_branch
        %6 = sbr.rel (0) target = $region9
      $region8: #{reverse.0} parent=4 // pred_region
        // Predicated region
        $region21: #{reverse.0} parent=8 // pred_check
          _
        $region22: #{reverse.0} parent=8 // pred_check_branch
          %35 = sbr.rel (0) target = $region24
        $region23: #{reverse.0} parent=8 // pred_region
          loop: start=0, step=1, limit=1
          $region25: #{reverse.0} parent=23 // loop_pre_header
            _
          $region26: #{reverse.0} parent=23 // loop_header
            %s37 = sphi 0, %s41
            %p38 = scmp.ge.s32.totalorder %s37, 1
            %s42 = sphi %s0, %s0
            %s43 = sphi %s2, %s2
          $region27: #{reverse.0} parent=23 // loop_header_branch
            %40 = sbr.rel (%p38) target = $region31
          $region28: #{reverse.0} parent=23 // loop_body
            %v44 = vld [vmem:[%s42] sm:$0xff]
            %45 = vst [vmem:[%s43] sm:$0xff] %v44
            %v46 = vld [vmem:[%s42 + $0x8] sm:$0xff]
            %47 = vst [vmem:[%s43 + $0x10] sm:$0xff] %v46
            %v48 = vld [vmem:[%s42 + $0x10] sm:$0xff]
            %49 = vst [vmem:[%s43 + $0x20] sm:$0xff] %v48
            %v50 = vld [vmem:[%s42 + $0x18] sm:$0xff]
            %51 = vst [vmem:[%s43 + $0x30] sm:$0xff] %v50
            %v52 = vld [vmem:[%s42 + $0x20] sm:$0xff]
            %53 = vst [vmem:[%s43 + $0x40] sm:$0xff] %v52
            %v54 = vld [vmem:[%s42 + $0x28] sm:$0xff]
            %55 = vst [vmem:[%s43 + $0x50] sm:$0xff] %v54
            %v56 = vld [vmem:[%s42 + $0x30] sm:$0xff]
            %57 = vst [vmem:[%s43 + $0x60] sm:$0xff] %v56
            %v58 = vld [vmem:[%s42 + $0x38] sm:$0xff]
            %59 = vst [vmem:[%s43 + $0x70] sm:$0xff] %v58
          $region29: #{reverse.0} parent=23 // loop_footer
            %s41 = sadd.s32 1, %s37
          $region30: #{reverse.0} parent=23 // loop_footer_branch
            %36 = sbr.rel target = $region26
          $region31: #{reverse.0} parent=23 // loop_exit
            _
        $region24: #{reverse.0} parent=8 // pred_fallthru
          _
        // Predicated region
        $region32: #{reverse.0} parent=8 // pred_check
          _
        $region33: #{reverse.0} parent=8 // pred_check_branch
          %61 = sbr.rel target = $region35
        $region34: #{reverse.0} parent=8 // pred_region
          _
        $region35: #{reverse.0} parent=8 // pred_fallthru
          _
      $region9: #{reverse.0} parent=4 // pred_fallthru
        _
      // Predicated region
      $region10: #{reverse.0} parent=4 // pred_check
        _
      $region11: #{reverse.0} parent=4 // pred_check_branch
        %8 = sbr.rel target = $region13
      $region12: #{reverse.0} parent=4 // pred_region
        loop: start=0, step=1, limit=1
        $region14: #{reverse.0} parent=12 // loop_pre_header
          _
        $region15: #{reverse.0} parent=12 // loop_header
          %s11 = sphi 0, %s15
          %p12 = scmp.ge.s32.totalorder %s11, 1
          %s16 = sphi %s0, %s0
          %s17 = sphi %s2, %s2
        $region16: #{reverse.0} parent=12 // loop_header_branch
          %14 = sbr.rel (%p12) target = $region20
        $region17: #{reverse.0} parent=12 // loop_body
          %v18 = vld [vmem:[%s16] sm:$0xff]
          %19 = vst [vmem:[%s17] sm:$0xff] %v18
          %v20 = vld [vmem:[%s16 + $0x8] sm:$0xff]
          %21 = vst [vmem:[%s17 + $0x10] sm:$0xff] %v20
          %v22 = vld [vmem:[%s16 + $0x10] sm:$0xff]
          %23 = vst [vmem:[%s17 + $0x20] sm:$0xff] %v22
          %v24 = vld [vmem:[%s16 + $0x18] sm:$0xff]
          %25 = vst [vmem:[%s17 + $0x30] sm:$0xff] %v24
          %v26 = vld [vmem:[%s16 + $0x20] sm:$0xff]
          %27 = vst [vmem:[%s17 + $0x40] sm:$0xff] %v26
          %v28 = vld [vmem:[%s16 + $0x28] sm:$0xff]
          %29 = vst [vmem:[%s17 + $0x50] sm:$0xff] %v28
          %v30 = vld [vmem:[%s16 + $0x30] sm:$0xff]
          %31 = vst [vmem:[%s17 + $0x60] sm:$0xff] %v30
          %v32 = vld [vmem:[%s16 + $0x38] sm:$0xff]
          %33 = vst [vmem:[%s17 + $0x70] sm:$0xff] %v32
        $region18: #{reverse.0} parent=12 // loop_footer
          %s15 = sadd.s32 1, %s11
        $region19: #{reverse.0} parent=12 // loop_footer_branch
          %10 = sbr.rel target = $region15
        $region20: #{reverse.0} parent=12 // loop_exit
          _
      $region13: #{reverse.0} parent=4 // pred_fallthru
        _
    $region5: #{reverse.0} parent=1 // pred_fallthru
      _
    %62 = vnop
    %s63 = scalar_lea.vmem [#allocation0], 7
    %v64 = vld [vmem:[%s63] ss:$-1 sm:$0xff]
    %v65 = vrot.slane %v64, 1
    %66 = vst [vmem:[#allocation1] sm:$0xff] %v65
    %s67 = scalar_lea.vmem [#allocation0], 8
    %s68 = scalar_lea.vmem %s67, 7 [#allocation0]
    %v69 = vld [vmem:[%s68] ss:$-1 sm:$0xff]
    %v70 = vrot.slane %v69, 1
    %v71 = vlaneseq
    %v72 = vshrl.u32 %v71, 7
    %vm73 = vcmp.lt.s32.totalorder %v72, 7
    %74 = vst.msk [vmem:[#allocation1] sm:$0xff] %vm73, %v70
    %s75 = scalar_lea.vmem [#allocation1], 8
    %s76 = scalar_lea.vmem [#allocation0], 16
    %s77 = scalar_lea.vmem %s76, 7 [#allocation0]
    %v78 = vld [vmem:[%s77] ss:$-1 sm:$0xff]
    %v79 = vrot.slane %v78, 1
    %80 = vst [vmem:[%s75] sm:$0xff] %v79
    %s81 = scalar_lea.vmem %s76, 8 [#allocation0]
    %s82 = scalar_lea.vmem %s81, 7 [#allocation0]
    %v83 = vld [vmem:[%s82] ss:$-1 sm:$0xff]
    %v84 = vrot.slane %v83, 1
    %v85 = vlaneseq
    %v86 = vshrl.u32 %v85, 7
    %vm87 = vcmp.lt.s32.totalorder %v86, 7
    %88 = vst.msk [vmem:[%s75] sm:$0xff] %vm87, %v84
    %s89 = scalar_lea.vmem [#allocation1], 16
    %s90 = scalar_lea.vmem [#allocation0], 32
    %s91 = scalar_lea.vmem %s90, 7 [#allocation0]
    %v92 = vld [vmem:[%s91] ss:$-1 sm:$0xff]
    %v93 = vrot.slane %v92, 1
    %94 = vst [vmem:[%s89] sm:$0xff] %v93
    %s95 = scalar_lea.vmem %s90, 8 [#allocation0]
    %s96 = scalar_lea.vmem %s95, 7 [#allocation0]
    %v97 = vld [vmem:[%s96] ss:$-1 sm:$0xff]
    %v98 = vrot.slane %v97, 1
    %v99 = vlaneseq
    %v100 = vshrl.u32 %v99, 7
    %vm101 = vcmp.lt.s32.totalorder %v100, 7
    %102 = vst.msk [vmem:[%s89] sm:$0xff] %vm101, %v98
    %s103 = scalar_lea.vmem [#allocation1], 24
    %s104 = scalar_lea.vmem [#allocation0], 48
    %s105 = scalar_lea.vmem %s104, 7 [#allocation0]
    %v106 = vld [vmem:[%s105] ss:$-1 sm:$0xff]
    %v107 = vrot.slane %v106, 1
    %108 = vst [vmem:[%s103] sm:$0xff] %v107
    %s109 = scalar_lea.vmem %s104, 8 [#allocation0]
    %s110 = scalar_lea.vmem %s109, 7 [#allocation0]
    %v111 = vld [vmem:[%s110] ss:$-1 sm:$0xff]
    %v112 = vrot.slane %v111, 1
    %v113 = vlaneseq
    %v114 = vshrl.u32 %v113, 7
    %vm115 = vcmp.lt.s32.totalorder %v114, 7
    %116 = vst.msk [vmem:[%s103] sm:$0xff] %vm115, %v112
    %s117 = scalar_lea.vmem [#allocation1], 32
    %s118 = scalar_lea.vmem [#allocation0], 64
    %s119 = scalar_lea.vmem %s118, 7 [#allocation0]
    %v120 = vld [vmem:[%s119] ss:$-1 sm:$0xff]
    %v121 = vrot.slane %v120, 1
    %122 = vst [vmem:[%s117] sm:$0xff] %v121
    %s123 = scalar_lea.vmem %s118, 8 [#allocation0]
    %s124 = scalar_lea.vmem %s123, 7 [#allocation0]
    %v125 = vld [vmem:[%s124] ss:$-1 sm:$0xff]
    %v126 = vrot.slane %v125, 1
    %v127 = vlaneseq
    %v128 = vshrl.u32 %v127, 7
    %vm129 = vcmp.lt.s32.totalorder %v128, 7
    %130 = vst.msk [vmem:[%s117] sm:$0xff] %vm129, %v126
    %s131 = scalar_lea.vmem [#allocation1], 40
    %s132 = scalar_lea.vmem [#allocation0], 80
    %s133 = scalar_lea.vmem %s132, 7 [#allocation0]
    %v134 = vld [vmem:[%s133] ss:$-1 sm:$0xff]
    %v135 = vrot.slane %v134, 1
    %136 = vst [vmem:[%s131] sm:$0xff] %v135
    %s137 = scalar_lea.vmem %s132, 8 [#allocation0]
    %s138 = scalar_lea.vmem %s137, 7 [#allocation0]
    %v139 = vld [vmem:[%s138] ss:$-1 sm:$0xff]
    %v140 = vrot.slane %v139, 1
    %v141 = vlaneseq
    %v142 = vshrl.u32 %v141, 7
    %vm143 = vcmp.lt.s32.totalorder %v142, 7
    %144 = vst.msk [vmem:[%s131] sm:$0xff] %vm143, %v140
    %s145 = scalar_lea.vmem [#allocation1], 48
    %s146 = scalar_lea.vmem [#allocation0], 96
    %s147 = scalar_lea.vmem %s146, 7 [#allocation0]
    %v148 = vld [vmem:[%s147] ss:$-1 sm:$0xff]
    %v149 = vrot.slane %v148, 1
    %150 = vst [vmem:[%s145] sm:$0xff] %v149
    %s151 = scalar_lea.vmem %s146, 8 [#allocation0]
    %s152 = scalar_lea.vmem %s151, 7 [#allocation0]
    %v153 = vld [vmem:[%s152] ss:$-1 sm:$0xff]
    %v154 = vrot.slane %v153, 1
    %v155 = vlaneseq
    %v156 = vshrl.u32 %v155, 7
    %vm157 = vcmp.lt.s32.totalorder %v156, 7
    %158 = vst.msk [vmem:[%s145] sm:$0xff] %vm157, %v154
    %s159 = scalar_lea.vmem [#allocation1], 56
    %s160 = scalar_lea.vmem [#allocation0], 112
    %s161 = scalar_lea.vmem %s160, 7 [#allocation0]
    %v162 = vld [vmem:[%s161] ss:$-1 sm:$0xff]
    %v163 = vrot.slane %v162, 1
    %164 = vst [vmem:[%s159] sm:$0xff] %v163
    %s165 = scalar_lea.vmem %s160, 8 [#allocation0]
    %s166 = scalar_lea.vmem %s165, 7 [#allocation0]
    %v167 = vld [vmem:[%s166] ss:$-1 sm:$0xff]
    %v168 = vrot.slane %v167, 1
    %v169 = vlaneseq
    %v170 = vshrl.u32 %v169, 7
    %vm171 = vcmp.lt.s32.totalorder %v170, 7
    %172 = vst.msk [vmem:[%s159] sm:$0xff] %vm171, %v168
    // Predicated region
    $region36: #{reverse.0} parent=1 // pred_check
      _
    $region37: #{reverse.0} parent=1 // pred_check_branch
      %174 = sbr.rel (0) target = $region39
    $region38: #{reverse.0} parent=1 // pred_region
      // Predicated region
      $region40: #{reverse.0} parent=38 // pred_check
        _
      $region41: #{reverse.0} parent=38 // pred_check_branch
        %176 = sbr.rel (0) target = $region43
      $region42: #{reverse.0} parent=38 // pred_region
        // Predicated region
        $region55: #{reverse.0} parent=42 // pred_check
          _
        $region56: #{reverse.0} parent=42 // pred_check_branch
          %205 = sbr.rel (0) target = $region58
        $region57: #{reverse.0} parent=42 // pred_region
          loop: start=0, step=1, limit=1
          $region59: #{reverse.0} parent=57 // loop_pre_header
            _
          $region60: #{reverse.0} parent=57 // loop_header
            %s207 = sphi 0, %s211
            %p208 = scmp.ge.s32.totalorder %s207, 1
            %s212 = sphi [#allocation1], [#allocation1]
            %s213 = sphi %s1, %s1
          $region61: #{reverse.0} parent=57 // loop_header_branch
            %210 = sbr.rel (%p208) target = $region65
          $region62: #{reverse.0} parent=57 // loop_body
            %v214 = vld [vmem:[%s212] sm:$0xff]
            %215 = vst [vmem:[%s213] sm:$0xff] %v214
            %v216 = vld [vmem:[%s212 + $0x8] sm:$0xff]
            %217 = vst [vmem:[%s213 + $0x8] sm:$0xff] %v216
            %v218 = vld [vmem:[%s212 + $0x10] sm:$0xff]
            %219 = vst [vmem:[%s213 + $0x10] sm:$0xff] %v218
            %v220 = vld [vmem:[%s212 + $0x18] sm:$0xff]
            %221 = vst [vmem:[%s213 + $0x18] sm:$0xff] %v220
            %v222 = vld [vmem:[%s212 + $0x20] sm:$0xff]
            %223 = vst [vmem:[%s213 + $0x20] sm:$0xff] %v222
            %v224 = vld [vmem:[%s212 + $0x28] sm:$0xff]
            %225 = vst [vmem:[%s213 + $0x28] sm:$0xff] %v224
            %v226 = vld [vmem:[%s212 + $0x30] sm:$0xff]
            %227 = vst [vmem:[%s213 + $0x30] sm:$0xff] %v226
            %v228 = vld [vmem:[%s212 + $0x38] sm:$0xff]
            %229 = vst [vmem:[%s213 + $0x38] sm:$0xff] %v228
          $region63: #{reverse.0} parent=57 // loop_footer
            %s211 = sadd.s32 1, %s207
          $region64: #{reverse.0} parent=57 // loop_footer_branch
            %206 = sbr.rel target = $region60
          $region65: #{reverse.0} parent=57 // loop_exit
            _
        $region58: #{reverse.0} parent=42 // pred_fallthru
          _
        // Predicated region
        $region66: #{reverse.0} parent=42 // pred_check
          _
        $region67: #{reverse.0} parent=42 // pred_check_branch
          %231 = sbr.rel target = $region69
        $region68: #{reverse.0} parent=42 // pred_region
          _
        $region69: #{reverse.0} parent=42 // pred_fallthru
          _
      $region43: #{reverse.0} parent=38 // pred_fallthru
        _
      // Predicated region
      $region44: #{reverse.0} parent=38 // pred_check
        _
      $region45: #{reverse.0} parent=38 // pred_check_branch
        %178 = sbr.rel target = $region47
      $region46: #{reverse.0} parent=38 // pred_region
        loop: start=0, step=1, limit=1
        $region48: #{reverse.0} parent=46 // loop_pre_header
          _
        $region49: #{reverse.0} parent=46 // loop_header
          %s181 = sphi 0, %s185
          %p182 = scmp.ge.s32.totalorder %s181, 1
          %s186 = sphi [#allocation1], [#allocation1]
          %s187 = sphi %s1, %s1
        $region50: #{reverse.0} parent=46 // loop_header_branch
          %184 = sbr.rel (%p182) target = $region54
        $region51: #{reverse.0} parent=46 // loop_body
          %v188 = vld [vmem:[%s186] sm:$0xff]
          %189 = vst [vmem:[%s187] sm:$0xff] %v188
          %v190 = vld [vmem:[%s186 + $0x8] sm:$0xff]
          %191 = vst [vmem:[%s187 + $0x8] sm:$0xff] %v190
          %v192 = vld [vmem:[%s186 + $0x10] sm:$0xff]
          %193 = vst [vmem:[%s187 + $0x10] sm:$0xff] %v192
          %v194 = vld [vmem:[%s186 + $0x18] sm:$0xff]
          %195 = vst [vmem:[%s187 + $0x18] sm:$0xff] %v194
          %v196 = vld [vmem:[%s186 + $0x20] sm:$0xff]
          %197 = vst [vmem:[%s187 + $0x20] sm:$0xff] %v196
          %v198 = vld [vmem:[%s186 + $0x28] sm:$0xff]
          %199 = vst [vmem:[%s187 + $0x28] sm:$0xff] %v198
          %v200 = vld [vmem:[%s186 + $0x30] sm:$0xff]
          %201 = vst [vmem:[%s187 + $0x30] sm:$0xff] %v200
          %v202 = vld [vmem:[%s186 + $0x38] sm:$0xff]
          %203 = vst [vmem:[%s187 + $0x38] sm:$0xff] %v202
        $region52: #{reverse.0} parent=46 // loop_footer
          %s185 = sadd.s32 1, %s181
        $region53: #{reverse.0} parent=46 // loop_footer_branch
          %180 = sbr.rel target = $region49
        $region54: #{reverse.0} parent=46 // loop_exit
          _
      $region47: #{reverse.0} parent=38 // pred_fallthru
        _
    $region39: #{reverse.0} parent=1 // pred_fallthru
      _
    %232 = vnop

// kernel: operator_block_2d.2
$region0: #{operator_block_2d.2}
  #allocation0 [shape = 'u32[]', space=smem, size = 0x4, offset = 0x4, fixed_abs, tag = 'smem constant byte address 0x4 - core index']
  #allocation1 [shape = 'u32[144,128]{1,0:T(1,128)}', space=vmem, size = 0x12000, scoped, tag = 'internal scratch']
  %s0 = inlined_call_operand.vmem [shape: f32[16,128], index: 0, kind: input, shape index: {}]
  %s1 = inlined_call_operand.vmem [shape: f32[64,128], index: 1, kind: input, shape index: {}]
  %s2 = inlined_call_operand.vmem [shape: f32[16,128], index: 2, kind: output, shape index: {}]
  %s3 = sld [smem:[#allocation0]]
  $region18: #{operator_block_2d.2} parent=0
    _
  %s5 = ssub.s32 1, %s3
  %s6 = scalar_select 0, %s5, %s3
  // Predicated region
  $region2: #{operator_block_2d.2} parent=0 // pred_check
    _
  $region3: #{operator_block_2d.2} parent=0 // pred_check_branch
    %8 = sbr.rel (0) target = $region5
  $region4: #{operator_block_2d.2} parent=0 // pred_region
    _
  $region5: #{operator_block_2d.2} parent=0 // pred_fallthru
    _
  // Predicated region
  $region6: #{operator_block_2d.2} parent=0 // pred_check
    _
  $region7: #{operator_block_2d.2} parent=0 // pred_check_branch
    %10 = sbr.rel (0) target = $region9
  $region8: #{operator_block_2d.2} parent=0 // pred_region
    _
  $region9: #{operator_block_2d.2} parent=0 // pred_fallthru
    _
  %v11 = vld [vmem:[%s0] sm:$0x1]
  %v12 = vld [vmem:[%s0 + $0x8] sm:$0x1]
  %v13 = vld [vmem:[%s1] sm:$0xff]
  %v14 = vld [vmem:[%s1 + $0x20] sm:$0xff]
  %v15 = vlaneseq
  %v16 = vshrl.u32 %v15, 7
  %v17 = vsub.s32 0, %v16
  %v18 = vrot.slane %v11, %v17
  %v19 = vmul.f32 %v18, %v13
  %v20 = vadd.f32 %v19, 0.0
  %v21 = vlaneseq
  %v22 = vshrl.u32 %v21, 7
  %v23 = vsub.s32 0, %v22
  %v24 = vrot.slane %v12, %v23
  %v25 = vmul.f32 %v24, %v14
  %v26 = vadd.f32 %v20, %v25
  %v27 = vld [vmem:[%s0 + $0x1] sm:$0x1]
  %v28 = vld [vmem:[%s0 + $0x9] sm:$0x1]
  %v29 = vld [vmem:[%s1 + $0x8] sm:$0xff]
  %v30 = vld [vmem:[%s1 + $0x28] sm:$0xff]
  %v31 = vlaneseq
  %v32 = vshrl.u32 %v31, 7
  %v33 = vsub.s32 0, %v32
  %v34 = vrot.slane %v27, %v33
  %v35 = vmul.f32 %v34, %v29
  %v36 = vadd.f32 %v26, %v35
  %v37 = vlaneseq
  %v38 = vshrl.u32 %v37, 7
  %v39 = vsub.s32 0, %v38
  %v40 = vrot.slane %v28, %v39
  %v41 = vmul.f32 %v40, %v30
  %v42 = vadd.f32 %v36, %v41
  %v43 = vld [vmem:[%s0 + $0x2] sm:$0x1]
  %v44 = vld [vmem:[%s0 + $0xa] sm:$0x1]
  %v45 = vld [vmem:[%s1 + $0x10] sm:$0xff]
  %v46 = vld [vmem:[%s1 + $0x30] sm:$0xff]
  %v47 = vlaneseq
  %v48 = vshrl.u32 %v47, 7
  %v49 = vsub.s32 0, %v48
  %v50 = vrot.slane %v43, %v49
  %v51 = vmul.f32 %v50, %v45
  %v52 = vadd.f32 %v42, %v51
  %v53 = vlaneseq
  %v54 = vshrl.u32 %v53, 7
  %v55 = vsub.s32 0, %v54
  %v56 = vrot.slane %v44, %v55
  %v57 = vmul.f32 %v56, %v46
  %v58 = vadd.f32 %v52, %v57
  %v59 = vld [vmem:[%s0 + $0x3] sm:$0x1]
  %v60 = vld [vmem:[%s0 + $0xb] sm:$0x1]
  %v61 = vld [vmem:[%s1 + $0x18] sm:$0xff]
  %v62 = vld [vmem:[%s1 + $0x38] sm:$0xff]
  %v63 = vlaneseq
  %v64 = vshrl.u32 %v63, 7
  %v65 = vsub.s32 0, %v64
  %v66 = vrot.slane %v59, %v65
  %v67 = vmul.f32 %v66, %v61
  %v68 = vadd.f32 %v58, %v67
  %v69 = vlaneseq
  %v70 = vshrl.u32 %v69, 7
  %v71 = vsub.s32 0, %v70
  %v72 = vrot.slane %v60, %v71
  %v73 = vmul.f32 %v72, %v62
  %v74 = vadd.f32 %v68, %v73
  %75 = vst [vmem:[%s2] sm:$0xff] %v74
  %v76 = vld [vmem:[%s0 + $0x4] sm:$0x1]
  %v77 = vld [vmem:[%s0 + $0xc] sm:$0x1]
  %v78 = vld [vmem:[%s1] sm:$0xff]
  %v79 = vld [vmem:[%s1 + $0x20] sm:$0xff]
  %v80 = vlaneseq
  %v81 = vshrl.u32 %v80, 7
  %v82 = vsub.s32 0, %v81
  %v83 = vrot.slane %v76, %v82
  %v84 = vmul.f32 %v83, %v78
  %v85 = vadd.f32 %v84, 0.0
  %v86 = vlaneseq
  %v87 = vshrl.u32 %v86, 7
  %v88 = vsub.s32 0, %v87
  %v89 = vrot.slane %v77, %v88
  %v90 = vmul.f32 %v89, %v79
  %v91 = vadd.f32 %v85, %v90
  %v92 = vld [vmem:[%s0 + $0x5] sm:$0x1]
  %v93 = vld [vmem:[%s0 + $0xd] sm:$0x1]
  %v94 = vld [vmem:[%s1 + $0x8] sm:$0xff]
  %v95 = vld [vmem:[%s1 + $0x28] sm:$0xff]
  %v96 = vlaneseq
  %v97 = vshrl.u32 %v96, 7
  %v98 = vsub.s32 0, %v97
  %v99 = vrot.slane %v92, %v98
  %v100 = vmul.f32 %v99, %v94
  %v101 = vadd.f32 %v91, %v100
  %v102 = vlaneseq
  %v103 = vshrl.u32 %v102, 7
  %v104 = vsub.s32 0, %v103
  %v105 = vrot.slane %v93, %v104
  %v106 = vmul.f32 %v105, %v95
  %v107 = vadd.f32 %v101, %v106
  %v108 = vld [vmem:[%s0 + $0x6] sm:$0x1]
  %v109 = vld [vmem:[%s0 + $0xe] sm:$0x1]
  %v110 = vld [vmem:[%s1 + $0x10] sm:$0xff]
  %v111 = vld [vmem:[%s1 + $0x30] sm:$0xff]
  %v112 = vlaneseq
  %v113 = vshrl.u32 %v112, 7
  %v114 = vsub.s32 0, %v113
  %v115 = vrot.slane %v108, %v114
  %v116 = vmul.f32 %v115, %v110
  %v117 = vadd.f32 %v107, %v116
  %v118 = vlaneseq
  %v119 = vshrl.u32 %v118, 7
  %v120 = vsub.s32 0, %v119
  %v121 = vrot.slane %v109, %v120
  %v122 = vmul.f32 %v121, %v111
  %v123 = vadd.f32 %v117, %v122
  %v124 = vld [vmem:[%s0 + $0x7] sm:$0x1]
  %v125 = vld [vmem:[%s0 + $0xf] sm:$0x1]
  %v126 = vld [vmem:[%s1 + $0x18] sm:$0xff]
  %v127 = vld [vmem:[%s1 + $0x38] sm:$0xff]
  %v128 = vlaneseq
  %v129 = vshrl.u32 %v128, 7
  %v130 = vsub.s32 0, %v129
  %v131 = vrot.slane %v124, %v130
  %v132 = vmul.f32 %v131, %v126
  %v133 = vadd.f32 %v123, %v132
  %v134 = vlaneseq
  %v135 = vshrl.u32 %v134, 7
  %v136 = vsub.s32 0, %v135
  %v137 = vrot.slane %v125, %v136
  %v138 = vmul.f32 %v137, %v127
  %v139 = vadd.f32 %v133, %v138
  %140 = vst [vmem:[%s2 + $0x8] sm:$0xff] %v139
  // Predicated region
  $region10: #{operator_block_2d.2} parent=0 // pred_check
    _
  $region11: #{operator_block_2d.2} parent=0 // pred_check_branch
    %142 = sbr.rel (0) target = $region13
  $region12: #{operator_block_2d.2} parent=0 // pred_region
    _
  $region13: #{operator_block_2d.2} parent=0 // pred_fallthru
    _
  // Predicated region
  $region14: #{operator_block_2d.2} parent=0 // pred_check
    _
  $region15: #{operator_block_2d.2} parent=0 // pred_check_branch
    %144 = sbr.rel (0) target = $region17
  $region16: #{operator_block_2d.2} parent=0 // pred_region
    _
  $region17: #{operator_block_2d.2} parent=0 // pred_fallthru
    _

// kernel: operator_block_2d.3
$region0: #{operator_block_2d.3}
  #allocation0 [shape = 'u32[]', space=smem, size = 0x4, offset = 0x4, fixed_abs, tag = 'smem constant byte address 0x4 - core index']
  #allocation1 [shape = 'u32[144,128]{1,0:T(1,128)}', space=vmem, size = 0x12000, scoped, tag = 'internal scratch']
  %s0 = inlined_call_operand.vmem [shape: f32[8,8], index: 0, kind: input, shape index: {}]
  %s1 = inlined_call_operand.vmem [shape: f32[8,1], index: 1, kind: input, shape index: {}]
  %s2 = inlined_call_operand.vmem [shape: f32[8,512], index: 2, kind: input, shape index: {}]
  %s3 = inlined_call_operand.vmem [shape: f32[8,512], index: 3, kind: input, shape index: {}]
  %s4 = inlined_call_operand.vmem [shape: f32[8,512], index: 4, kind: output, shape index: {}]
  %s5 = sld [smem:[#allocation0]]
  $region49: #{operator_block_2d.3} parent=0
    _
  %s7 = ssub.s32 1, %s5
  %s8 = scalar_select 0, %s7, %s5
  loop: start=0, step=1, limit=4
  $region2: #{operator_block_2d.3} parent=0 // loop_pre_header
    _
  $region3: #{operator_block_2d.3} parent=0 // loop_header
    %s10 = sphi 0, %s14
    %p11 = scmp.ge.s32.totalorder %s10, 4
    %s18 = sphi 0, %s18
    %s20 = sphi 0, %s18
    %s21 = sphi 0, %s20
    %s35 = sphi 0, %s21
    %s39 = sphi 0, %s39
    %s41 = sphi 0, %s39
    %s42 = sphi 0, %s41
    %s56 = sphi 0, %s42
    %s62 = sphi 0, %s64
    %s65 = sphi 0, %s62
    %s66 = sphi 0, %s65
    %s82 = sphi 0, %s66
    %s88 = sphi 0, %s90
    %s91 = sphi 0, %s88
    %s92 = sphi 0, %s91
    %s108 = sphi 0, %s92
    %s114 = sphi 0, %s116
    %s117 = sphi 0, %s114
    %s118 = sphi 0, %s117
    %s134 = sphi 0, %s118
  $region4: #{operator_block_2d.3} parent=0 // loop_header_branch
    %13 = sbr.rel (%p11) target = $region8
  $region5: #{operator_block_2d.3} parent=0 // loop_body
    %s15 = ssub.s32 %s10, 1
    %s16 = ssub.s32 %s10, 2
    %s17 = sadd.s32 %s10, 1
    %s19 = sadd.s32 %s18, 1
    %p22 = scmp.eq.s32.totalorder %s10, 1
    %p23 = scmp.ne.s32.totalorder %s18, %s20
    %p24 = scmp.eq.s32.totalorder %s10, 0
    %p25 = por %p23, %p24
    %p26 = scmp.ne.s32.totalorder %s18, %s20
    %p27 = scmp.eq.s32.totalorder %s15, 1
    %p28 = por %p26, %p27
    %p29 = scmp.ne.s32.totalorder %s20, %s21
    %p30 = scmp.eq.s32.totalorder %s15, 0
    %p31 = por %p29, %p30
    %p32 = scmp.ne.s32.totalorder %s20, %s21
    %p33 = scmp.eq.s32.totalorder %s16, 1
    %p34 = por %p32, %p33
    %p36 = scmp.ne.s32.totalorder %s21, %s35
    %p37 = scmp.eq.s32.totalorder %s16, 0
    %p38 = por %p36, %p37
    %s40 = sadd.s32 %s39, 1
    %p43 = scmp.eq.s32.totalorder %s10, 1
    %p44 = scmp.ne.s32.totalorder %s39, %s41
    %p45 = scmp.eq.s32.totalorder %s10, 0
    %p46 = por %p44, %p45
    %p47 = scmp.ne.s32.totalorder %s39, %s41
    %p48 = scmp.eq.s32.totalorder %s15, 1
    %p49 = por %p47, %p48
    %p50 = scmp.ne.s32.totalorder %s41, %s42
    %p51 = scmp.eq.s32.totalorder %s15, 0
    %p52 = por %p50, %p51
    %p53 = scmp.ne.s32.totalorder %s41, %s42
    %p54 = scmp.eq.s32.totalorder %s16, 1
    %p55 = por %p53, %p54
    %p57 = scmp.ne.s32.totalorder %s42, %s56
    %p58 = scmp.eq.s32.totalorder %s16, 0
    %p59 = por %p57, %p58
    %s60 = ssub.s32 %s10, %s17
    %p61 = scmp.eq.s32.totalorder %s60, 0
    %s63 = sadd.s32 %s62, 1
    %s64 = scalar_select %p61, %s62, %s63
    %p67 = pneg %p61
    %p68 = scmp.eq.s32.totalorder %s10, 1
    %p69 = por %p67, %p68
    %p70 = scmp.ne.s32.totalorder %s62, %s65
    %p71 = scmp.eq.s32.totalorder %s10, 0
    %p72 = por %p70, %p71
    %p73 = scmp.ne.s32.totalorder %s62, %s65
    %p74 = scmp.eq.s32.totalorder %s15, 1
    %p75 = por %p73, %p74
    %p76 = scmp.ne.s32.totalorder %s65, %s66
    %p77 = scmp.eq.s32.totalorder %s15, 0
    %p78 = por %p76, %p77
    %p79 = scmp.ne.s32.totalorder %s65, %s66
    %p80 = scmp.eq.s32.totalorder %s16, 1
    %p81 = por %p79, %p80
    %p83 = scmp.ne.s32.totalorder %s66, %s82
    %p84 = scmp.eq.s32.totalorder %s16, 0
    %p85 = por %p83, %p84
    %s86 = ssub.s32 %s10, %s17
    %p87 = scmp.eq.s32.totalorder %s86, 0
    %s89 = sadd.s32 %s88, 1
    %s90 = scalar_select %p87, %s88, %s89
    %p93 = pneg %p87
    %p94 = scmp.eq.s32.totalorder %s10, 1
    %p95 = por %p93, %p94
    %p96 = scmp.ne.s32.totalorder %s88, %s91
    %p97 = scmp.eq.s32.totalorder %s10, 0
    %p98 = por %p96, %p97
    %p99 = scmp.ne.s32.totalorder %s88, %s91
    %p100 = scmp.eq.s32.totalorder %s15, 1
    %p101 = por %p99, %p100
    %p102 = scmp.ne.s32.totalorder %s91, %s92
    %p103 = scmp.eq.s32.totalorder %s15, 0
    %p104 = por %p102, %p103
    %p105 = scmp.ne.s32.totalorder %s91, %s92
    %p106 = scmp.eq.s32.totalorder %s16, 1
    %p107 = por %p105, %p106
    %p109 = scmp.ne.s32.totalorder %s92, %s108
    %p110 = scmp.eq.s32.totalorder %s16, 0
    %p111 = por %p109, %p110
    %s112 = ssub.s32 %s10, %s17
    %p113 = scmp.eq.s32.totalorder %s112, 0
    %s115 = sadd.s32 %s114, 1
    %s116 = scalar_select %p113, %s114, %s115
    %p119 = pneg %p113
    %p120 = scmp.eq.s32.totalorder %s10, 1
    %p121 = por %p119, %p120
    %p122 = scmp.ne.s32.totalorder %s114, %s117
    %p123 = scmp.eq.s32.totalorder %s10, 0
    %p124 = por %p122, %p123
    %p125 = scmp.ne.s32.totalorder %s114, %s117
    %p126 = scmp.eq.s32.totalorder %s15, 1
    %p127 = por %p125, %p126
    %p128 = scmp.ne.s32.totalorder %s117, %s118
    %p129 = scmp.eq.s32.totalorder %s15, 0
    %p130 = por %p128, %p129
    %p131 = scmp.ne.s32.totalorder %s117, %s118
    %p132 = scmp.eq.s32.totalorder %s16, 1
    %p133 = por %p131, %p132
    %p135 = scmp.ne.s32.totalorder %s118, %s134
    %p136 = scmp.eq.s32.totalorder %s16, 0
    %p137 = por %p135, %p136
    %p138 = scmp.le.s32.totalorder 1, %s10
    %p139 = scmp.lt.s32.totalorder %s10, 3
    %p140 = pnand %p138, %p139
    %p141 = pneg %p140
    // Predicated region
    $region9: #{operator_block_2d.3} parent=5 // pred_check
      _
    $region10: #{operator_block_2d.3} parent=5 // pred_check_branch
      %143 = sbr.rel (%p140) target = $region12
    $region11: #{operator_block_2d.3} parent=5 // pred_region
      %s144 = ssub.s32 %s10, 1
      // Predicated region
      $region13: #{operator_block_2d.3} parent=11 // pred_check
        %p145 = pneg %p31
      $region14: #{operator_block_2d.3} parent=11 // pred_check_branch
        %147 = sbr.rel (%p145) target = $region16
      $region15: #{operator_block_2d.3} parent=11 // pred_region
        _
      $region16: #{operator_block_2d.3} parent=11 // pred_fallthru
        _
      // Predicated region
      $region17: #{operator_block_2d.3} parent=11 // pred_check
        %p148 = pneg %p52
      $region18: #{operator_block_2d.3} parent=11 // pred_check_branch
        %150 = sbr.rel (%p148) target = $region20
      $region19: #{operator_block_2d.3} parent=11 // pred_region
        _
      $region20: #{operator_block_2d.3} parent=11 // pred_fallthru
        _
    $region12: #{operator_block_2d.3} parent=5 // pred_fallthru
      _
    %p151 = scmp.lt.s32.totalorder %s10, 2
    // Predicated region
    $region21: #{operator_block_2d.3} parent=5 // pred_check
      %p152 = pneg %p151
    $region22: #{operator_block_2d.3} parent=5 // pred_check_branch
      %154 = sbr.rel (%p152) target = $region24
    $region23: #{operator_block_2d.3} parent=5 // pred_region
      // Predicated region
      $region25: #{operator_block_2d.3} parent=23 // pred_check
        %p155 = pneg %p72
      $region26: #{operator_block_2d.3} parent=23 // pred_check_branch
        %157 = sbr.rel (%p155) target = $region28
      $region27: #{operator_block_2d.3} parent=23 // pred_region
        %s158 = smul.u32 2, %s10
        %p159 = scmp.lt.s32.totalorder %s158, 3
        %s160 = scalar_select %p159, %s158, 3
        %s161 = smul.addr %s160, 8
        %s162 = scalar_lea.vmem %s2, %s161
        %s163 = smul.u32 2, %s10
      $region28: #{operator_block_2d.3} parent=23 // pred_fallthru
        _
      // Predicated region
      $region29: #{operator_block_2d.3} parent=23 // pred_check
        %p164 = pneg %p98
      $region30: #{operator_block_2d.3} parent=23 // pred_check_branch
        %166 = sbr.rel (%p164) target = $region32
      $region31: #{operator_block_2d.3} parent=23 // pred_region
        %s167 = smul.u32 2, %s10
        %p168 = scmp.lt.s32.totalorder %s167, 3
        %s169 = scalar_select %p168, %s167, 3
        %s170 = smul.addr %s169, 8
        %s171 = scalar_lea.vmem %s3, %s170
        %s172 = smul.u32 2, %s10
      $region32: #{operator_block_2d.3} parent=23 // pred_fallthru
        _
    $region24: #{operator_block_2d.3} parent=5 // pred_fallthru
      _
    %p173 = scmp.le.s32.totalorder 1, %s10
    %p174 = scmp.lt.s32.totalorder %s10, 3
    %p175 = pnand %p173, %p174
    %p176 = pneg %p175
    // Predicated region
    $region33: #{operator_block_2d.3} parent=5 // pred_check
      _
    $region34: #{operator_block_2d.3} parent=5 // pred_check_branch
      %178 = sbr.rel (%p175) target = $region36
    $region35: #{operator_block_2d.3} parent=5 // pred_region
      %s179 = ssub.s32 %s10, 1
      %p180 = pneg %p31
      %p181 = pneg %p28
      %p182 = pneg %p52
      %p183 = pneg %p49
      %s184 = smul.u32 2, %s15
      %p185 = scmp.lt.s32.totalorder %s184, 3
      %s186 = scalar_select %p185, %s184, 3
      %s187 = smul.addr %s186, 8
      %s188 = scalar_lea.vmem %s2, %s187
      %p189 = pneg %p78
      %p190 = pneg %p75
      %s191 = smul.u32 2, %s15
      %p192 = scmp.lt.s32.totalorder %s191, 3
      %s193 = scalar_select %p192, %s191, 3
      %s194 = smul.addr %s193, 8
      %s195 = scalar_lea.vmem %s3, %s194
      %p196 = pneg %p104
      %p197 = pneg %p101
      %p198 = pneg %p130
      %p199 = pneg %p127
      %s200 = smul.u32 2, %s15
      %p201 = scmp.lt.s32.totalorder %s200, 3
      %s202 = scalar_select %p201, %s200, 3
      %s203 = smul.addr %s202, 8
      %s204 = scalar_lea.vmem %s4, %s203
      %s205 = smul.u32 2, %s15
      %p206 = scmp.lt.s32.totalorder %s205, 3
      %s207 = scalar_select %p206, %s205, 3
      %s208 = smul.addr %s207, 8
      %s209 = scalar_lea.vmem %s2, %s208
      %s210 = smul.u32 2, %s15
      %s211 = smul.u32 2, %s15
      %p212 = scmp.lt.s32.totalorder %s211, 3
      %s213 = scalar_select %p212, %s211, 3
      %s214 = smul.addr %s213, 8
      %s215 = scalar_lea.vmem %s3, %s214
      %s216 = smul.u32 2, %s15
      %s217 = smul.u32 2, %s15
      %p218 = scmp.lt.s32.totalorder %s217, 3
      %s219 = scalar_select %p218, %s217, 3
      %s220 = smul.addr %s219, 8
      %s221 = scalar_lea.vmem %s4, %s220
      %s222 = smul.u32 2, %s15
      %v223 = vld [vmem:[%s215] sm:$0xff]
      %v224 = vld [vmem:[%s215 + $0x8] sm:$0xff]
      %v225 = vld [vmem:[%s1] sm:$0xff]
      %227 = vset.pattern.permute.xlu0 0
      %228 = vperm.xlu0 %227, %v225
      %v229 = vpop.permute.xlu0 %228
      %v231 = vadd.f32 %v223, %v229
      %v232 = vadd.f32 %v224, %v229
      %v233 = vld [vmem:[%s0] sm:$0xff]
      %v234 = vld [vmem:[%s209] sm:$0xff]
      %v235 = vld [vmem:[%s209 + $0x8] sm:$0xff]
      %vm236 = vcmask 64512
      %v238 = vsel %vm236, %v233, 0
      %240 = vmatprep.subr.mxu0 %v235
      %241 = vmatpush1.msra.mxu0 %v234
      %242 = vmatprep.subr.mxu0 0.0
      %243 = vmatpush1.msra.mxu0 0.0
      %244 = vmatprep.subr.mxu0 0.0
      %245 = vmatpush1.msra.mxu0 0.0
      %246 = vmatprep.subr.mxu0 0.0
      %247 = vmatpush1.msra.mxu0 0.0
      %248 = vmatprep.subr.mxu0 0.0
      %249 = vmatpush1.msra.mxu0 0.0
      %250 = vmatprep.subr.mxu0 0.0
      %251 = vmatpush1.msra.mxu0 0.0
      %252 = vmatprep.subr.mxu0 0.0
      %253 = vmatpush1.msra.mxu0 0.0
      %254 = vmatprep.subr.mxu0 0.0
      %255 = vmatpush1.msra.mxu0 0.0
      %256 = vmatprep.subr.mxu0 0.0
      %257 = vmatpush1.msra.mxu0 0.0
      %258 = vmatprep.subr.mxu0 0.0
      %259 = vmatpush1.msra.mxu0 0.0
      %260 = vmatprep.subr.mxu0 0.0
      %261 = vmatpush1.msra.mxu0 0.0
      %262 = vmatprep.subr.mxu0 0.0
      %263 = vmatpush1.msra.mxu0 0.0
      %264 = vmatprep.subr.mxu0 0.0
      %265 = vmatpush1.msra.mxu0 0.0
      %266 = vmatprep.subr.mxu0 0.0
      %267 = vmatpush1.msra.mxu0 0.0
      %268 = vmatprep.subr.mxu0 0.0
      %269 = vmatpush1.msra.mxu0 0.0
      %270 = vmatprep.subr.mxu0 0.0
      %271 = vmatpush1.msra.mxu0 0.0
      %272 = vmatprep.subr.mxu0 0.0
      %273 = vmatpush1.msra.mxu0 0.0
      %274 = vmatprep.subr.mxu0 0.0
      %275 = vmatpush1.msra.mxu0 0.0
      %276 = vmatprep.subr.mxu0 0.0
      %277 = vmatpush1.msra.mxu0 0.0
      %278 = vmatprep.subr.mxu0 0.0
      %279 = vmatpush1.msra.mxu0 0.0
      %280 = vmatprep.subr.mxu0 0.0
      %281 = vmatpush1.msra.mxu0 0.0
      %282 = vmatprep.subr.mxu0 0.0
      %283 = vmatpush1.msra.mxu0 0.0
      %284 = vmatprep.subr.mxu0 0.0
      %285 = vmatpush1.msra.mxu0 0.0
      %286 = vmatprep.subr.mxu0 0.0
      %287 = vmatpush1.msra.mxu0 0.0
      %288 = vmatprep.subr.mxu0 0.0
      %289 = vmatpush1.msra.mxu0 0.0
      %290 = vmatprep.subr.mxu0 0.0
      %291 = vmatpush1.msra.mxu0 0.0
      %292 = vmatprep.subr.mxu0 0.0
      %293 = vmatpush1.msra.mxu0 0.0
      %294 = vmatprep.subr.mxu0 0.0
      %295 = vmatpush1.msra.mxu0 0.0
      %296 = vmatprep.subr.mxu0 0.0
      %297 = vmatpush1.msra.mxu0 0.0
      %298 = vmatprep.subr.mxu0 0.0
      %299 = vmatpush1.msra.mxu0 0.0
      %300 = vmatprep.subr.mxu0 0.0
      %301 = vmatpush1.msra.mxu0 0.0
      %302 = vmatprep.subr.mxu0 0.0
      %303 = vmatpush1.msra.mxu0 0.0
      %304 = vmatprep.mubr.f32.mxu0 0.0
      %305 = vmatmul.mubr.f32.gmra.mrb[0].mxu0 %v238
      %v306 = vpop.f32.mrb[0].mxu0
      %v307 = vadd.f32 0.0, %v306
      %v308 = vpop.f32.mrb[0].mxu0
      %v309 = vadd.f32 0.0, %v308
      %310 = vdwg.mxu0
      %v311 = vadd.f32 %v231, %v307
      %v312 = vadd.f32 %v232, %v309
      %v313 = vmul.f32 %v311, 0.5
      %v314 = vmul.f32 %v312, 0.5
      %v315 = vmul.f32 %v311, 0.70710677
      %v316 = vmul.f32 %v312, 0.70710677
      %v317 = vand.u32 2147483647, %v315
      %v318 = vand.u32 2147483647, %v316
      %v319 = vmul.f32 %v317, 0.3275911
      %v320 = vmul.f32 %v318, 0.3275911
      %v321 = vadd.f32 %v319, 1.0
      %v322 = vadd.f32 %v320, 1.0
      %v323 = vrcp.pop %v321
      %v324 = vmul.f32 1.0, %v323
      %v325 = vrcp.pop %v322
      %v326 = vmul.f32 1.0, %v325
      %v327 = vmul.f32 %v324, 1.0614054
      %v328 = vmul.f32 %v326, 1.0614054
      %v329 = vadd.f32 %v327, -1.4531521
      %v330 = vadd.f32 %v328, -1.4531521
      %v331 = vmul.f32 %v329, %v324
      %v332 = vmul.f32 %v330, %v326
      %v333 = vadd.f32 %v331, 1.4214138
      %v334 = vadd.f32 %v332, 1.4214138
      %v335 = vmul.f32 %v333, %v324
      %v336 = vmul.f32 %v334, %v326
      %v337 = vadd.f32 %v335, -0.28449672
      %v338 = vadd.f32 %v336, -0.28449672
      %v339 = vmul.f32 %v337, %v324
      %v340 = vmul.f32 %v338, %v326
      %v341 = vadd.f32 %v339, 0.2548296
      %v342 = vadd.f32 %v340, 0.2548296
      %v343 = vmul.f32 %v341, %v324
      %v344 = vmul.f32 %v342, %v326
      %v345 = vsub.f32 0.0, %v317
      %v346 = vsub.f32 0.0, %v318
      %v347 = vmul.f32 %v345, %v317
      %v348 = vmul.f32 %v346, %v318
      %v349 = vmul.f32 %v347, 1.442695
      %v350 = vpow.pop %v349
      %v351 = vmul.f32 %v348, 1.442695
      %v352 = vpow.pop %v351
      %v353 = vmul.f32 %v343, %v350
      %v354 = vmul.f32 %v344, %v352
      %v355 = vsub.f32 1.0, %v353
      %v356 = vsub.f32 1.0, %v354
      %vm357 = vcmp.lt.f32.partialorder %v315, 0.0
      %vm358 = vcmp.lt.f32.partialorder %v316, 0.0
      %v359 = vsub.f32 0.0, %v355
      %v360 = vsub.f32 0.0, %v356
      %v361 = vsel %vm357, %v359, %v355
      %v362 = vsel %vm358, %v360, %v356
      %v363 = vadd.f32 %v361, 1.0
      %v364 = vadd.f32 %v362, 1.0
      %v365 = vmul.f32 %v313, %v363
      %v366 = vmul.f32 %v314, %v364
      %367 = vst [vmem:[%s221] sm:$0xff] %v365
      %368 = vst [vmem:[%s221 + $0x8] sm:$0xff] %v366
      %s369 = smul.u32 2, %s15
      %p370 = scmp.lt.s32.totalorder %s369, 3
      %s371 = scalar_select %p370, %s369, 3
      %s372 = smul.addr %s371, 8
      %s373 = scalar_lea.vmem %s4, %s372
      // Predicated region
      $region37: #{operator_block_2d.3} parent=35 // pred_check
        %p374 = pneg %p127
      $region38: #{operator_block_2d.3} parent=35 // pred_check_branch
        %376 = sbr.rel (%p374) target = $region40
      $region39: #{operator_block_2d.3} parent=35 // pred_region
        %s377 = smul.u32 2, %s15
      $region40: #{operator_block_2d.3} parent=35 // pred_fallthru
        _
    $region36: #{operator_block_2d.3} parent=5 // pred_fallthru
      _
    %p378 = scmp.le.s32.totalorder 2, %s10
    // Predicated region
    $region41: #{operator_block_2d.3} parent=5 // pred_check
      %p379 = pneg %p378
    $region42: #{operator_block_2d.3} parent=5 // pred_check_branch
      %381 = sbr.rel (%p379) target = $region44
    $region43: #{operator_block_2d.3} parent=5 // pred_region
      %s382 = ssub.s32 %s10, 2
      // Predicated region
      $region45: #{operator_block_2d.3} parent=43 // pred_check
        %p383 = pneg %p133
      $region46: #{operator_block_2d.3} parent=43 // pred_check_branch
        %385 = sbr.rel (%p383) target = $region48
      $region47: #{operator_block_2d.3} parent=43 // pred_region
        %s386 = smul.u32 2, %s16
        %p387 = scmp.lt.s32.totalorder %s386, 3
        %s388 = scalar_select %p387, %s386, 3
        %s389 = smul.addr %s388, 8
        %s390 = scalar_lea.vmem %s4, %s389
      $region48: #{operator_block_2d.3} parent=43 // pred_fallthru
        _
    $region44: #{operator_block_2d.3} parent=5 // pred_fallthru
      _
  $region6: #{operator_block_2d.3} parent=0 // loop_footer
    %s14 = sadd.s32 1, %s10
  $region7: #{operator_block_2d.3} parent=0 // loop_footer_branch
    %9 = sbr.rel target = $region3
  $region8: #{operator_block_2d.3} parent=0 // loop_exit
    _

</llo_original>
